<compile_context>
chip_gen: v6e
topology: v6e:2x2x1
jax: 0.10.0
libtpu: 0.0.40
codegen_flags: <defaults>
</compile_context>

<pallas_src>
import math

import jax
import jax.numpy as jnp
from jax import lax
from jax.experimental import pallas as pl
from jax.experimental.pallas import tpu as pltpu


def _round_up(a, b):
    return ((a + b - 1) // b) * b


def _cdiv(a, b):
    return (a + b - 1) // b


def _vmem_capacity_bytes():
    try:
        return int(pltpu.get_tpu_info().vmem_capacity_bytes)
    except Exception:
        return 64 * 1024 * 1024          # conservative (v7x-sized) fallback


def _make_biasfree_ln_kernel(g, c, eps):
    """Kernel over a (tile_rows, g*c) lane-dense block; w_ref is (1, g*c) pre-tiled."""

    def kernel(x_ref, w_ref, o_ref):
        x = x_ref[...].astype(jnp.float32)          # one full-width load
        w = w_ref[...].astype(jnp.float32)          # (1, g*c), already tiled in wrapper
        rows = x.shape[0]

        if g == 1:
            mean = jnp.mean(x, axis=-1, keepdims=True)
            d = x - mean
            var = jnp.mean(d * d, axis=-1, keepdims=True)
            scale = lax.rsqrt(var + eps)            # (rows, 1) — broadcasts in the multiply
        else:
            # Per-group stats on slices of the loaded value (vreg lane slices),
            # never on the ref, so in-kernel VMEM loads/stores stay full-width.
            pieces = []
            for j in range(g):                      # static unroll over folded rows
                xj = x[:, j * c:(j + 1) * c]        # (rows, c) value slice
                mean = jnp.mean(xj, axis=-1, keepdims=True)
                d = xj - mean
                var = jnp.mean(d * d, axis=-1, keepdims=True)   # biased, centered form
                inv = lax.rsqrt(var + eps)          # EUP rsqrt (free slot)
                pieces.append(jnp.broadcast_to(inv, (rows, c)))
            scale = jnp.concatenate(pieces, axis=-1)            # (rows, g*c)

        # One full-width multiply + one unmasked full-width store.
        o_ref[...] = (x * (scale * w)).astype(o_ref.dtype)

    return kernel


def biasfree_layernorm(x, weight, *, eps=1e-5):
    """x: (..., C) array, weight: (C,). Returns same shape/dtype as x."""
    orig_shape = x.shape
    c = orig_shape[-1]
    assert weight.shape == (c,)

    rows = math.prod(orig_shape[:-1]) if len(orig_shape) > 1 else 1
    if rows == 0:
        return x

    x2d = x.reshape(-1, c)
    itemsize = jnp.dtype(x.dtype).itemsize
    sub_mult = max(8, 32 // itemsize)               # 8 f32 / 16 bf16 / 32 int8-fp8

    # ---- fold rows into the lane axis so HBM DMA blocks are lane-dense --------
    if c % 128 == 0:
        g = 1                                       # already a multiple of 128 lanes
    else:
        g = math.lcm(c, 128) // c
        # Only fold when the folded reshape is free (rows divisible by g) and the
        # lane width stays reasonable; otherwise fall back to full-C last dim.
        if g * c > 2048 or rows % g != 0:
            g = 1
    lane_width = g * c
    grouped_rows = rows // g
    xg = x2d if g == 1 else x2d.reshape(grouped_rows, lane_width)  # free row-major fold

    # ---- VMEM-budgeted, capped row tiles; >= ~8 grid steps for large inputs ----
    cap = _vmem_capacity_bytes()
    budget = min(16 << 20, cap // 4)
    per_row_bytes = lane_width * (4 * itemsize + 12)   # dbl-buffered in+out + f32 temps
    tr_cap = min(1024, max(sub_mult, (budget // per_row_bytes) // sub_mult * sub_mult))

    if grouped_rows <= sub_mult:
        tr = grouped_rows                           # block == full array dim (allowed)
    else:
        min_steps = 8                               # >= ~4 per TC on 2-TC parts
        steps = max(_cdiv(grouped_rows, tr_cap), min_steps)
        tr = _round_up(_cdiv(grouped_rows, steps), sub_mult)
        tr = max(sub_mult, min(tr, tr_cap))
    grid = (_cdiv(grouped_rows, tr),)               # no padding: last block is partial

    # ---- tight VMEM scoped limit --------------------------------------------
    block_bytes = tr * lane_width * itemsize
    need = 4 * block_bytes + 4 * tr * lane_width * 4 + (8 << 20)
    vmem_limit = int(min(max(need, 32 << 20), 64 << 20, cap - (8 << 20)))

    # Pre-tiled weight: one full-width multiply inside the kernel.
    w_full = (weight.reshape(1, c) if g == 1
              else jnp.tile(weight, g).reshape(1, lane_width))

    kernel = _make_biasfree_ln_kernel(g, c, float(eps))

    out = pl.pallas_call(
        kernel,
        out_shape=jax.ShapeDtypeStruct((grouped_rows, lane_width), x.dtype),
        grid_spec=pltpu.PrefetchScalarGridSpec(
            num_scalar_prefetch=0,
            grid=grid,
            in_specs=[
                pl.BlockSpec((tr, lane_width), lambda i: (i, 0)),   # x rows tile
                pl.BlockSpec((1, lane_width), lambda i: (0, 0)),    # shared weight
            ],
            out_specs=pl.BlockSpec((tr, lane_width), lambda i: (i, 0)),
        ),
        compiler_params=pltpu.CompilerParams(
            dimension_semantics=("parallel",),
            vmem_limit_bytes=vmem_limit,
        ),
        cost_estimate=pl.CostEstimate(
            flops=8 * rows * c,
            transcendentals=rows,
            bytes_accessed=2 * rows * c * itemsize
            + lane_width * jnp.dtype(weight.dtype).itemsize,
        ),
    )(xg, w_full)

    return out.reshape(orig_shape)


if __name__ == "__main__":
    key = jax.random.PRNGKey(0)

    # (batch, tokens, channels) — typical "B x HW x C" layout this module sees.
    B, L, C = 2, 64, 32
    x = jax.random.normal(key, (B, L, C), dtype=jnp.float32)
    weight = jnp.ones((C,), dtype=jnp.float32)      # matches nn.Parameter(torch.ones(C))

    out = jax.block_until_ready(biasfree_layernorm(x, weight))
    sigma = jnp.var(x, axis=-1, keepdims=True)
    ref = x / jnp.sqrt(sigma + 1e-5) * weight
    assert out.shape == x.shape and out.dtype == x.dtype
    assert jnp.allclose(out, ref, atol=1e-5, rtol=1e-5)

    # Awkward row count: rows % g != 0 -> g=1 fallback + partial last grid block.
    x2 = jax.random.normal(jax.random.PRNGKey(1), (5, 7, C), dtype=jnp.float32)
    w2 = jax.random.normal(jax.random.PRNGKey(2), (C,), dtype=jnp.float32)
    out2 = jax.block_until_ready(biasfree_layernorm(x2, w2))
    ref2 = x2 / jnp.sqrt(jnp.var(x2, axis=-1, keepdims=True) + 1e-5) * w2
    assert jnp.allclose(out2, ref2, atol=1e-5, rtol=1e-5)

    # bf16, C multiple of 128: g=1 lane-dense path, 16-row sublane tiles.
    x3 = jax.random.normal(jax.random.PRNGKey(3), (4, 128, 128), dtype=jnp.bfloat16)
    w3 = jnp.ones((128,), dtype=jnp.bfloat16)
    out3 = jax.block_until_ready(biasfree_layernorm(x3, w3))
    x3f = x3.astype(jnp.float32)
    ref3 = (x3f / jnp.sqrt(jnp.var(x3f, axis=-1, keepdims=True) + 1e-5)).astype(jnp.bfloat16)
    assert out3.dtype == jnp.bfloat16
    assert jnp.allclose(out3.astype(jnp.float32), ref3.astype(jnp.float32),
                        atol=5e-2, rtol=5e-2)

    print("KERNEL_OK")
</pallas_src>

<mosaic_0001>
module attributes {stable_mosaic.version = 11 : i64} {
  func.func @kernel(%arg0: i32, %arg1: memref<8x128xf32, #tpu.memory_space<vmem>>, %arg2: memref<1x128xf32, #tpu.memory_space<vmem>>, %arg3: memref<8x128xf32, #tpu.memory_space<vmem>>) attributes {dimension_semantics = [#tpu.dimension_semantics<parallel>], iteration_bounds = array<i64: 4>, scalar_prefetch = 0 : i64, scratch_operands = 0 : i64, tpu.core_type = #tpu.core_type<tc>, window_params = [{transform_indices = @transform_0, window_bounds = array<i64: 8, 128>}, {pipeline_mode = #tpu.pipeline_mode<synchronous>, transform_indices = @transform_1, window_bounds = array<i64: 1, 128>}, {transform_indices = @transform_2, window_bounds = array<i64: 8, 128>}]} {
    %c0 = arith.constant 0 : index
    %c0_0 = arith.constant 0 : index
    %0 = vector.load %arg1[%c0, %c0_0] : memref<8x128xf32, #tpu.memory_space<vmem>>, vector<8x128xf32>
    %c0_1 = arith.constant 0 : index
    %c0_2 = arith.constant 0 : index
    %1 = vector.load %arg2[%c0_1, %c0_2] : memref<1x128xf32, #tpu.memory_space<vmem>>, vector<1x128xf32>
    %2 = vector.extract_strided_slice %0 {offsets = [0, 0], sizes = [8, 32], strides = [1, 1]} : vector<8x128xf32> to vector<8x32xf32>
    %cst = arith.constant dense<0.000000e+00> : vector<8xf32>
    %3 = vector.multi_reduction <add>, %2, %cst [1] : vector<8x32xf32> to vector<8xf32>
    %4 = vector.shape_cast %3 : vector<8xf32> to vector<8x1xf32>
    %cst_3 = arith.constant 3.200000e+01 : f32
    %5 = vector.broadcast %cst_3 : f32 to vector<8x1xf32>
    %6 = arith.divf %4, %5 : vector<8x1xf32>
    %7 = vector.broadcast %6 : vector<8x1xf32> to vector<8x32xf32>
    %8 = arith.subf %2, %7 : vector<8x32xf32>
    %9 = arith.mulf %8, %8 : vector<8x32xf32>
    %cst_4 = arith.constant dense<0.000000e+00> : vector<8xf32>
    %10 = vector.multi_reduction <add>, %9, %cst_4 [1] : vector<8x32xf32> to vector<8xf32>
    %11 = vector.shape_cast %10 : vector<8xf32> to vector<8x1xf32>
    %cst_5 = arith.constant 3.200000e+01 : f32
    %12 = vector.broadcast %cst_5 : f32 to vector<8x1xf32>
    %13 = arith.divf %11, %12 : vector<8x1xf32>
    %cst_6 = arith.constant 9.99999974E-6 : f32
    %14 = vector.broadcast %cst_6 : f32 to vector<8x1xf32>
    %15 = arith.addf %13, %14 : vector<8x1xf32>
    %16 = math.rsqrt %15 : vector<8x1xf32>
    %17 = vector.shape_cast %16 : vector<8x1xf32> to vector<8x1xf32>
    %18 = vector.broadcast %17 : vector<8x1xf32> to vector<8x32xf32>
    %19 = vector.extract_strided_slice %0 {offsets = [0, 32], sizes = [8, 32], strides = [1, 1]} : vector<8x128xf32> to vector<8x32xf32>
    %cst_7 = arith.constant dense<0.000000e+00> : vector<8xf32>
    %20 = vector.multi_reduction <add>, %19, %cst_7 [1] : vector<8x32xf32> to vector<8xf32>
    %21 = vector.shape_cast %20 : vector<8xf32> to vector<8x1xf32>
    %cst_8 = arith.constant 3.200000e+01 : f32
    %22 = vector.broadcast %cst_8 : f32 to vector<8x1xf32>
    %23 = arith.divf %21, %22 : vector<8x1xf32>
    %24 = vector.broadcast %23 : vector<8x1xf32> to vector<8x32xf32>
    %25 = arith.subf %19, %24 : vector<8x32xf32>
    %26 = arith.mulf %25, %25 : vector<8x32xf32>
    %cst_9 = arith.constant dense<0.000000e+00> : vector<8xf32>
    %27 = vector.multi_reduction <add>, %26, %cst_9 [1] : vector<8x32xf32> to vector<8xf32>
    %28 = vector.shape_cast %27 : vector<8xf32> to vector<8x1xf32>
    %cst_10 = arith.constant 3.200000e+01 : f32
    %29 = vector.broadcast %cst_10 : f32 to vector<8x1xf32>
    %30 = arith.divf %28, %29 : vector<8x1xf32>
    %cst_11 = arith.constant 9.99999974E-6 : f32
    %31 = vector.broadcast %cst_11 : f32 to vector<8x1xf32>
    %32 = arith.addf %30, %31 : vector<8x1xf32>
    %33 = math.rsqrt %32 : vector<8x1xf32>
    %34 = vector.shape_cast %33 : vector<8x1xf32> to vector<8x1xf32>
    %35 = vector.broadcast %34 : vector<8x1xf32> to vector<8x32xf32>
    %36 = vector.extract_strided_slice %0 {offsets = [0, 64], sizes = [8, 32], strides = [1, 1]} : vector<8x128xf32> to vector<8x32xf32>
    %cst_12 = arith.constant dense<0.000000e+00> : vector<8xf32>
    %37 = vector.multi_reduction <add>, %36, %cst_12 [1] : vector<8x32xf32> to vector<8xf32>
    %38 = vector.shape_cast %37 : vector<8xf32> to vector<8x1xf32>
    %cst_13 = arith.constant 3.200000e+01 : f32
    %39 = vector.broadcast %cst_13 : f32 to vector<8x1xf32>
    %40 = arith.divf %38, %39 : vector<8x1xf32>
    %41 = vector.broadcast %40 : vector<8x1xf32> to vector<8x32xf32>
    %42 = arith.subf %36, %41 : vector<8x32xf32>
    %43 = arith.mulf %42, %42 : vector<8x32xf32>
    %cst_14 = arith.constant dense<0.000000e+00> : vector<8xf32>
    %44 = vector.multi_reduction <add>, %43, %cst_14 [1] : vector<8x32xf32> to vector<8xf32>
    %45 = vector.shape_cast %44 : vector<8xf32> to vector<8x1xf32>
    %cst_15 = arith.constant 3.200000e+01 : f32
    %46 = vector.broadcast %cst_15 : f32 to vector<8x1xf32>
    %47 = arith.divf %45, %46 : vector<8x1xf32>
    %cst_16 = arith.constant 9.99999974E-6 : f32
    %48 = vector.broadcast %cst_16 : f32 to vector<8x1xf32>
    %49 = arith.addf %47, %48 : vector<8x1xf32>
    %50 = math.rsqrt %49 : vector<8x1xf32>
    %51 = vector.shape_cast %50 : vector<8x1xf32> to vector<8x1xf32>
    %52 = vector.broadcast %51 : vector<8x1xf32> to vector<8x32xf32>
    %53 = vector.extract_strided_slice %0 {offsets = [0, 96], sizes = [8, 32], strides = [1, 1]} : vector<8x128xf32> to vector<8x32xf32>
    %cst_17 = arith.constant dense<0.000000e+00> : vector<8xf32>
    %54 = vector.multi_reduction <add>, %53, %cst_17 [1] : vector<8x32xf32> to vector<8xf32>
    %55 = vector.shape_cast %54 : vector<8xf32> to vector<8x1xf32>
    %cst_18 = arith.constant 3.200000e+01 : f32
    %56 = vector.broadcast %cst_18 : f32 to vector<8x1xf32>
    %57 = arith.divf %55, %56 : vector<8x1xf32>
    %58 = vector.broadcast %57 : vector<8x1xf32> to vector<8x32xf32>
    %59 = arith.subf %53, %58 : vector<8x32xf32>
    %60 = arith.mulf %59, %59 : vector<8x32xf32>
    %cst_19 = arith.constant dense<0.000000e+00> : vector<8xf32>
    %61 = vector.multi_reduction <add>, %60, %cst_19 [1] : vector<8x32xf32> to vector<8xf32>
    %62 = vector.shape_cast %61 : vector<8xf32> to vector<8x1xf32>
    %cst_20 = arith.constant 3.200000e+01 : f32
    %63 = vector.broadcast %cst_20 : f32 to vector<8x1xf32>
    %64 = arith.divf %62, %63 : vector<8x1xf32>
    %cst_21 = arith.constant 9.99999974E-6 : f32
    %65 = vector.broadcast %cst_21 : f32 to vector<8x1xf32>
    %66 = arith.addf %64, %65 : vector<8x1xf32>
    %67 = math.rsqrt %66 : vector<8x1xf32>
    %68 = vector.shape_cast %67 : vector<8x1xf32> to vector<8x1xf32>
    %69 = vector.broadcast %68 : vector<8x1xf32> to vector<8x32xf32>
    %70 = tpu.concatenate %18, %35, %52, %69 in 1 : vector<8x32xf32>, vector<8x32xf32>, vector<8x32xf32>, vector<8x32xf32> -> vector<8x128xf32>
    %71 = vector.broadcast %1 : vector<1x128xf32> to vector<8x128xf32>
    %72 = arith.mulf %70, %71 : vector<8x128xf32>
    %73 = arith.mulf %0, %72 : vector<8x128xf32>
    %c0_22 = arith.constant 0 : index
    %c0_23 = arith.constant 0 : index
    %74 = vector.load %arg3[%c0_22, %c0_23] : memref<8x128xf32, #tpu.memory_space<vmem>>, vector<8x128xf32>
    tpu.vector_store %arg3[%c0_22, %c0_23], %73 {strides = array<i32>} : memref<8x128xf32, #tpu.memory_space<vmem>>, vector<8x128xf32>,
    return
  }
  func.func @transform_0(%arg0: i32) -> (i32, i32) {
    %c0_i32 = arith.constant 0 : i32
    %c0_i32_0 = arith.constant 0 : i32
    return %arg0, %c0_i32 : i32, i32
  }
  func.func @transform_1(%arg0: i32) -> (i32, i32) {
    %c0_i32 = arith.constant 0 : i32
    %c0_i32_0 = arith.constant 0 : i32
    %c0_i32_1 = arith.constant 0 : i32
    return %c0_i32, %c0_i32_0 : i32, i32
  }
  func.func @transform_2(%arg0: i32) -> (i32, i32) {
    %c0_i32 = arith.constant 0 : i32
    %c0_i32_0 = arith.constant 0 : i32
    return %arg0, %c0_i32 : i32, i32
  }
}

</mosaic_0001>

<llo_original>
// kernel: tpu_custom_call.1
$region0: #{tpu_custom_call.1}
  #allocation0 [shape = 'u32[]', space=smem, size = 0x4, offset = 0x4, fixed_abs, tag = 'smem constant byte address 0x4 - core index']
  #allocation1 [shape = 'u32[144,128]{1,0:T(1,128)}', space=vmem, size = 0x12000, scoped, tag = 'internal scratch']
  %s0 = inlined_call_operand.hbm [shape: f32[32,128], index: 0, kind: input, shape index: {}]
  %s1 = inlined_call_operand.vmem [shape: f32[1,128], index: 1, kind: input, shape index: {}]
  %s2 = inlined_call_operand.hbm [shape: f32[32,128], index: 2, kind: output, shape index: {}]
  %s3 = sld [smem:[#allocation0]]
  $region45: #{tpu_custom_call.1} parent=0
    _
  %s5 = ssub.s32 1, %s3
  %s6 = scalar_select 0, %s5, %s3
  $region1: #{tpu_custom_call.1} parent=0
    #allocation2 [shape = 'u8[8192]{0}', space=vmem, size = 0x2000, scoped, tag = 'input window, operand 0']
    #allocation3 [shape = 's32[2]{0}', space=sflag, size = 0x8, scoped, tag = 'scoped memory for tpu_custom_call.1']
    #allocation4 [shape = 's32[2]{0}', space=sflag, size = 0x8, scoped, tag = 'scoped memory for tpu_custom_call.1']
    #allocation5 [shape = 'u8[8192]{0}', space=vmem, size = 0x2000, scoped, tag = 'output window, operand 0']
    %7 = vsyncpa [#allocation3], 0
    %s8 = scalar_lea.sflag [#allocation3], 1
    %9 = vsyncpa %s8, 0
    %10 = vsyncpa [#allocation4], 0
    %s11 = scalar_lea.sflag [#allocation4], 1
    %12 = vsyncpa %s11, 0
    loop: start=0, step=1, limit=6
    $region2: #{tpu_custom_call.1} parent=1 // loop_pre_header
      _
    $region3: #{tpu_custom_call.1} parent=1 // loop_header
      %s14 = sphi 0, %s18
      %p15 = scmp.ge.s32.totalorder %s14, 6
      %s24 = sphi 0, %s26
      %s27 = sphi 0, %s24
      %s28 = sphi 0, %s27
      %s44 = sphi 0, %s28
      %s48 = sphi 0, %s48
      %s50 = sphi 0, %s48
      %s51 = sphi 0, %s50
      %s65 = sphi 0, %s51
      %s71 = sphi 0, %s73
      %s74 = sphi 0, %s71
      %s75 = sphi 0, %s74
      %s91 = sphi 0, %s75
    $region4: #{tpu_custom_call.1} parent=1 // loop_header_branch
      %17 = sbr.rel (%p15) target = $region8
    $region5: #{tpu_custom_call.1} parent=1 // loop_body
      %s19 = ssub.s32 %s14, 1
      %s20 = ssub.s32 %s14, 2
      %s21 = sadd.s32 %s14, 1
      %s22 = ssub.s32 %s14, %s21
      %p23 = scmp.eq.s32.totalorder %s22, 0
      %s25 = sadd.s32 %s24, 1
      %s26 = scalar_select %p23, %s24, %s25
      %p29 = pneg %p23
      %p30 = scmp.eq.s32.totalorder %s14, 3
      %p31 = por %p29, %p30
      %p32 = scmp.ne.s32.totalorder %s24, %s27
      %p33 = scmp.eq.s32.totalorder %s14, 0
      %p34 = por %p32, %p33
      %p35 = scmp.ne.s32.totalorder %s24, %s27
      %p36 = scmp.eq.s32.totalorder %s19, 3
      %p37 = por %p35, %p36
      %p38 = scmp.ne.s32.totalorder %s27, %s28
      %p39 = scmp.eq.s32.totalorder %s19, 0
      %p40 = por %p38, %p39
      %p41 = scmp.ne.s32.totalorder %s27, %s28
      %p42 = scmp.eq.s32.totalorder %s20, 3
      %p43 = por %p41, %p42
      %p45 = scmp.ne.s32.totalorder %s28, %s44
      %p46 = scmp.eq.s32.totalorder %s20, 0
      %p47 = por %p45, %p46
      %s49 = sadd.s32 %s48, 1
      %p52 = scmp.eq.s32.totalorder %s14, 3
      %p53 = scmp.ne.s32.totalorder %s48, %s50
      %p54 = scmp.eq.s32.totalorder %s14, 0
      %p55 = por %p53, %p54
      %p56 = scmp.ne.s32.totalorder %s48, %s50
      %p57 = scmp.eq.s32.totalorder %s19, 3
      %p58 = por %p56, %p57
      %p59 = scmp.ne.s32.totalorder %s50, %s51
      %p60 = scmp.eq.s32.totalorder %s19, 0
      %p61 = por %p59, %p60
      %p62 = scmp.ne.s32.totalorder %s50, %s51
      %p63 = scmp.eq.s32.totalorder %s20, 3
      %p64 = por %p62, %p63
      %p66 = scmp.ne.s32.totalorder %s51, %s65
      %p67 = scmp.eq.s32.totalorder %s20, 0
      %p68 = por %p66, %p67
      %s69 = ssub.s32 %s14, %s21
      %p70 = scmp.eq.s32.totalorder %s69, 0
      %s72 = sadd.s32 %s71, 1
      %s73 = scalar_select %p70, %s71, %s72
      %p76 = pneg %p70
      %p77 = scmp.eq.s32.totalorder %s14, 3
      %p78 = por %p76, %p77
      %p79 = scmp.ne.s32.totalorder %s71, %s74
      %p80 = scmp.eq.s32.totalorder %s14, 0
      %p81 = por %p79, %p80
      %p82 = scmp.ne.s32.totalorder %s71, %s74
      %p83 = scmp.eq.s32.totalorder %s19, 3
      %p84 = por %p82, %p83
      %p85 = scmp.ne.s32.totalorder %s74, %s75
      %p86 = scmp.eq.s32.totalorder %s19, 0
      %p87 = por %p85, %p86
      %p88 = scmp.ne.s32.totalorder %s74, %s75
      %p89 = scmp.eq.s32.totalorder %s20, 3
      %p90 = por %p88, %p89
      %p92 = scmp.ne.s32.totalorder %s75, %s91
      %p93 = scmp.eq.s32.totalorder %s20, 0
      %p94 = por %p92, %p93
      %p95 = scmp.le.s32.totalorder 1, %s14
      %p96 = scmp.lt.s32.totalorder %s14, 5
      %p97 = pnand %p95, %p96
      %p98 = pneg %p97
      // Predicated region
      $region9: #{tpu_custom_call.1} parent=5 // pred_check
        _
      $region10: #{tpu_custom_call.1} parent=5 // pred_check_branch
        %100 = sbr.rel (%p97) target = $region12
      $region11: #{tpu_custom_call.1} parent=5 // pred_region
        %s101 = ssub.s32 %s14, 1
        // Predicated region
        $region13: #{tpu_custom_call.1} parent=11 // pred_check
          %p102 = pneg %p61
        $region14: #{tpu_custom_call.1} parent=11 // pred_check_branch
          %104 = sbr.rel (%p102) target = $region16
        $region15: #{tpu_custom_call.1} parent=11 // pred_region
          _
        $region16: #{tpu_custom_call.1} parent=11 // pred_fallthru
          _
      $region12: #{tpu_custom_call.1} parent=5 // pred_fallthru
        _
      %p105 = scmp.lt.s32.totalorder %s14, 4
      // Predicated region
      $region17: #{tpu_custom_call.1} parent=5 // pred_check
        %p106 = pneg %p105
      $region18: #{tpu_custom_call.1} parent=5 // pred_check_branch
        %108 = sbr.rel (%p106) target = $region20
      $region19: #{tpu_custom_call.1} parent=5 // pred_region
        // Predicated region
        $region21: #{tpu_custom_call.1} parent=19 // pred_check
          %p109 = pneg %p34
        $region22: #{tpu_custom_call.1} parent=19 // pred_check_branch
          %111 = sbr.rel (%p109) target = $region24
        $region23: #{tpu_custom_call.1} parent=19 // pred_region
          %s112 = sand.u32 %s24, 1
          %s113 = scalar_lea.sflag [#allocation3], %s112
          %s114 = sand.u32 %s24, 1
          %s115 = smul.addr %s114, 8
          %s116 = scalar_lea.vmem [#allocation2], %s115
          %s118 = ssub.s32 128, 128
          %119 = vsyncadd %s113, %s118
          %s120 = smul.addr %s14, 128
          %s121 = scalar_lea.hbm %s0, %s120
          %s123 = sshll.u32 %s116, 4
          %s124 = int_to_ptr.vmem [resolvable:$true] %s123
          %126 = dma.hbm_to_vmem [thread:$0]  %s121, 128, %s124, %s113
        $region24: #{tpu_custom_call.1} parent=19 // pred_fallthru
          _
      $region20: #{tpu_custom_call.1} parent=5 // pred_fallthru
        _
      %p127 = scmp.le.s32.totalorder 1, %s14
      %p128 = scmp.lt.s32.totalorder %s14, 5
      %p129 = pnand %p127, %p128
      %p130 = pneg %p129
      // Predicated region
      $region25: #{tpu_custom_call.1} parent=5 // pred_check
        _
      $region26: #{tpu_custom_call.1} parent=5 // pred_check_branch
        %132 = sbr.rel (%p129) target = $region28
      $region27: #{tpu_custom_call.1} parent=5 // pred_region
        %s133 = ssub.s32 %s14, 1
        %s134 = sand.u32 %s27, 1
        %s135 = scalar_lea.sflag [#allocation3], %s134
        %s136 = sand.u32 %s27, 1
        %s137 = smul.addr %s136, 8
        %s138 = scalar_lea.vmem [#allocation2], %s137
        // Predicated region
        $region29: #{tpu_custom_call.1} parent=27 // pred_check
          %p139 = pneg %p40
        $region30: #{tpu_custom_call.1} parent=27 // pred_check_branch
          %141 = sbr.rel (%p139) target = $region32
        $region31: #{tpu_custom_call.1} parent=27 // pred_region
          %142 = dma.done %s135, 128
        $region32: #{tpu_custom_call.1} parent=27 // pred_fallthru
          _
        %s143 = sand.u32 %s27, 1
        %s144 = scalar_lea.sflag [#allocation3], %s143
        %s145 = sand.u32 %s27, 1
        %s146 = smul.addr %s145, 8
        %s147 = scalar_lea.vmem [#allocation2], %s146
        %p148 = pneg %p40
        %p149 = pneg %p37
        %p150 = pneg %p61
        %p151 = pneg %p58
        %p152 = pneg %p87
        %p153 = pneg %p84
        %s154 = sand.u32 %s74, 1
        %s155 = scalar_lea.sflag [#allocation4], %s154
        %s156 = sand.u32 %s74, 1
        %s157 = smul.addr %s156, 8
        %s158 = scalar_lea.vmem [#allocation5], %s157
        %v159 = vld [vmem:[%s138] sm:$0xff]
        %v160 = vld [vmem:[%s1] sm:$0x1]
        %vm161 = vcmask 261120
        %v162 = vsel %vm161, %v159, 0.0
        %163 = vadd.xlane.f32.xlu0 %v162
        %v164 = vpop.xlane.xlu0 %163
        %v165 = vrcp.pop 32.0
        %v166 = vmul.f32 %v164, %v165
        %v167 = vsub.f32 %v159, %v166
        %v168 = vmul.f32 %v167, %v167
        %v169 = vsel %vm161, %v168, 0.0
        %170 = vadd.xlane.f32.xlu0 %v169
        %v171 = vpop.xlane.xlu0 %170
        %v172 = vmul.f32 %v171, %v165
        %v173 = vadd.f32 %v172, 1e-05
        %v174 = vrsqrt.pop %v173
        %176 = vrot.lane.b32.xlu0 %v159, 96
        %v177 = vpop.permute.xlu0 %176
        %v179 = vsel %vm161, %v177, 0.0
        %180 = vadd.xlane.f32.xlu0 %v179
        %v181 = vpop.xlane.xlu0 %180
        %v182 = vmul.f32 %v181, %v165
        %v183 = vsub.f32 %v159, %v182
        %v184 = vmul.f32 %v183, %v183
        %186 = vrot.lane.b32.xlu0 %v184, 96
        %v187 = vpop.permute.xlu0 %186
        %v189 = vsel %vm161, %v187, 0.0
        %190 = vadd.xlane.f32.xlu0 %v189
        %v191 = vpop.xlane.xlu0 %190
        %v192 = vmul.f32 %v191, %v165
        %v193 = vadd.f32 %v192, 1e-05
        %v194 = vrsqrt.pop %v193
        %195 = vrot.lane.b32.xlu0 %v159, 64
        %v196 = vpop.permute.xlu0 %195
        %v198 = vsel %vm161, %v196, 0.0
        %199 = vadd.xlane.f32.xlu0 %v198
        %v200 = vpop.xlane.xlu0 %199
        %v201 = vmul.f32 %v200, %v165
        %v202 = vsub.f32 %v159, %v201
        %v203 = vmul.f32 %v202, %v202
        %205 = vrot.lane.b32.xlu0 %v203, 64
        %v206 = vpop.permute.xlu0 %205
        %v208 = vsel %vm161, %v206, 0.0
        %209 = vadd.xlane.f32.xlu0 %v208
        %v210 = vpop.xlane.xlu0 %209
        %v211 = vmul.f32 %v210, %v165
        %v212 = vadd.f32 %v211, 1e-05
        %v213 = vrsqrt.pop %v212
        %214 = vrot.lane.b32.xlu0 %v159, 32
        %v215 = vpop.permute.xlu0 %214
        %v217 = vsel %vm161, %v215, 0.0
        %218 = vadd.xlane.f32.xlu0 %v217
        %v219 = vpop.xlane.xlu0 %218
        %v220 = vmul.f32 %v219, %v165
        %v221 = vsub.f32 %v159, %v220
        %v222 = vmul.f32 %v221, %v221
        %224 = vrot.lane.b32.xlu0 %v222, 32
        %v225 = vpop.permute.xlu0 %224
        %v227 = vsel %vm161, %v225, 0.0
        %228 = vadd.xlane.f32.xlu0 %v227
        %v229 = vpop.xlane.xlu0 %228
        %v230 = vmul.f32 %v229, %v165
        %v231 = vadd.f32 %v230, 1e-05
        %v232 = vrsqrt.pop %v231
        %v233 = vsel %vm161, %v174, %v194
        %vm234 = vcmask 523264
        %v235 = vsel %vm234, %v233, %v213
        %vm236 = vcmask 785408
        %v237 = vsel %vm236, %v235, %v232
        %v239 = vlaneseq
        %v240 = vshrl.u32 %v239, 7
        %v241 = vsub.s32 0, %v240
        %v242 = vrot.slane %v160, %v241
        %v244 = vmul.f32 %v237, %v242
        %v245 = vmul.f32 %v159, %v244
        %246 = vst [vmem:[%s158] sm:$0xff] %v245
        %s247 = sand.u32 %s74, 1
        %s248 = scalar_lea.sflag [#allocation4], %s247
        %s249 = sand.u32 %s74, 1
        %s250 = smul.addr %s249, 8
        %s251 = scalar_lea.vmem [#allocation5], %s250
        // Predicated region
        $region33: #{tpu_custom_call.1} parent=27 // pred_check
          %p252 = pneg %p84
        $region34: #{tpu_custom_call.1} parent=27 // pred_check_branch
          %254 = sbr.rel (%p252) target = $region36
        $region35: #{tpu_custom_call.1} parent=27 // pred_region
          %s256 = ssub.s32 128, 128
          %257 = vsyncadd %s248, %s256
          %s258 = smul.addr %s19, 128
          %s259 = scalar_lea.hbm %s2, %s258
          %s261 = sshll.u32 %s251, 4
          %s262 = int_to_ptr.vmem [resolvable:$true] %s261
          %264 = dma.vmem_to_hbm [thread:$0]  %s262, 128, %s259, %s248
        $region36: #{tpu_custom_call.1} parent=27 // pred_fallthru
          _
      $region28: #{tpu_custom_call.1} parent=5 // pred_fallthru
        _
      %p265 = scmp.le.s32.totalorder 2, %s14
      // Predicated region
      $region37: #{tpu_custom_call.1} parent=5 // pred_check
        %p266 = pneg %p265
      $region38: #{tpu_custom_call.1} parent=5 // pred_check_branch
        %268 = sbr.rel (%p266) target = $region40
      $region39: #{tpu_custom_call.1} parent=5 // pred_region
        %s269 = ssub.s32 %s14, 2
        // Predicated region
        $region41: #{tpu_custom_call.1} parent=39 // pred_check
          %p270 = pneg %p90
        $region42: #{tpu_custom_call.1} parent=39 // pred_check_branch
          %272 = sbr.rel (%p270) target = $region44
        $region43: #{tpu_custom_call.1} parent=39 // pred_region
          %s273 = sand.u32 %s75, 1
          %s274 = scalar_lea.sflag [#allocation4], %s273
          %s275 = sand.u32 %s75, 1
          %s276 = smul.addr %s275, 8
          %s277 = scalar_lea.vmem [#allocation5], %s276
          %278 = dma.done %s274, 128
        $region44: #{tpu_custom_call.1} parent=39 // pred_fallthru
          _
      $region40: #{tpu_custom_call.1} parent=5 // pred_fallthru
        _
    $region6: #{tpu_custom_call.1} parent=1 // loop_footer
      %s18 = sadd.s32 1, %s14
    $region7: #{tpu_custom_call.1} parent=1 // loop_footer_branch
      %13 = sbr.rel target = $region3
    $region8: #{tpu_custom_call.1} parent=1 // loop_exit
      _
    %279 = vsyncpa [#allocation3], 1
    %s280 = scalar_lea.sflag [#allocation3], 1
    %281 = vsyncpa %s280, 1
    %282 = vsyncpa [#allocation4], 1
    %s283 = scalar_lea.sflag [#allocation4], 1
    %284 = vsyncpa %s283, 1

</llo_original>
